<compile_context>
chip_gen: v5e
topology: v5e:2x2
jax: 0.10.0
libtpu: 0.0.40
codegen_flags: <defaults>
</compile_context>

<pallas_src>
import functools

import jax
import jax.numpy as jnp
from jax.experimental import pallas as pl
from jax.experimental.pallas import tpu as pltpu


# Per-block input budget and explicit scoped-VMEM limit.
#   2x double-buffered 8 MiB inputs + (possible) f32 temp + outputs stays well
#   under 48 MiB, which itself is safe on v5e/v6e (128 MiB) and v7x (64 MiB).
_BLOCK_BUDGET = 8 << 20
_VMEM_LIMIT = 48 << 20


def _pool_kernel(x_ref, o_ref, *, inv_c):
    # x_ref: (1, C, S, 128)  ->  o_ref: (1, 1, S, 128)
    # f32 accumulation over the channel axis, compile-time 1/C scale.
    s = jnp.sum(x_ref[...], axis=1, keepdims=True, dtype=jnp.float32)
    o_ref[...] = (s * inv_c).astype(o_ref.dtype)


def _pool_acc_kernel(x_ref, o_ref, acc_ref, *, inv_c):
    # Channel-tiled variant: grid axis 2 walks channel blocks (reduction axis,
    # "arbitrary", last).  acc_ref: (1, 1, S, 128) f32 VMEM scratch.
    k = pl.program_id(2)

    @pl.when(k == 0)
    def _():
        acc_ref[...] = jnp.zeros_like(acc_ref)

    acc_ref[...] += jnp.sum(x_ref[...], axis=1, keepdims=True, dtype=jnp.float32)

    @pl.when(k == pl.num_programs(2) - 1)
    def _():
        o_ref[...] = (acc_ref[...] * inv_c).astype(o_ref.dtype)


def _pick_spatial_tile(r: int, row_bytes: int, budget: int) -> int:
    """Spatial tile (rows of 128 lanes) for a (1, C, s_tile, 128) input block.

    Prefer the full extent r (one contiguous HBM chunk per channel); otherwise
    the largest multiple of 8 dividing r that fits the budget; otherwise the
    largest multiple of 8 that fits (grid uses pl.cdiv; Pallas clips the
    partial boundary block on the output side, which is safe because the
    reduction never mixes spatial rows).
    """
    if r * row_bytes <= budget:
        return r
    max_rows = max(8, budget // max(1, row_bytes))
    max_rows = (max_rows // 8) * 8
    best_div = 0
    t = 8
    while t <= min(r, max_rows):
        if r % t == 0:
            best_div = t
        t += 8
    return best_div if best_div > 0 else max_rows


def channel_pool(x: jnp.ndarray, *, block_budget_bytes: int = _BLOCK_BUDGET) -> jnp.ndarray:
    """x: (N, C, H, W) -> (N, 1, H, W), mean over channels (PyTorch semantics).

    TODO(synk): integer input dtypes would accumulate in f32 and truncate back
    on store; PyTorch's mean on integer tensors is not defined the same way.
    Float/bf16 inputs (the module's use case) match exactly.
    """
    n, c, h, w = x.shape
    hw = h * w
    dtype_bytes = jnp.dtype(x.dtype).itemsize
    inv_c = 1.0 / c

    # Pad flattened HW to a multiple of 128 so every shape takes the fast path.
    hw_pad = pl.cdiv(hw, 128) * 128
    x3 = x.reshape(n, c, hw)
    if hw_pad != hw:
        x3 = jnp.pad(x3, ((0, 0), (0, 0), (0, hw_pad - hw)))
    r = hw_pad // 128
    x4 = x3.reshape(n, c, r, 128)

    cost = pl.CostEstimate(
        flops=n * c * hw_pad,
        transcendentals=0,
        bytes_accessed=(n * c * hw_pad + n * hw_pad) * dtype_bytes,
    )

    row_bytes = c * 128 * dtype_bytes          # bytes per spatial row, all channels
    min_rows = min(8, r)                       # smallest legal sublane tile

    if min_rows * row_bytes <= block_budget_bytes:
        # Whole channel dim in one block; tile batch and (if needed) spatial rows.
        s_tile = _pick_spatial_tile(r, row_bytes, block_budget_bytes)
        grid = (n, pl.cdiv(r, s_tile))
        out4 = pl.pallas_call(
            functools.partial(_pool_kernel, inv_c=inv_c),
            out_shape=jax.ShapeDtypeStruct((n, 1, r, 128), x.dtype),
            grid_spec=pltpu.PrefetchScalarGridSpec(
                num_scalar_prefetch=0,
                grid=grid,
                in_specs=[
                    pl.BlockSpec((1, c, s_tile, 128), lambda i, j: (i, 0, j, 0))
                ],
                out_specs=pl.BlockSpec((1, 1, s_tile, 128), lambda i, j: (i, 0, j, 0)),
            ),
            compiler_params=pltpu.CompilerParams(
                dimension_semantics=("parallel", "parallel"),
                vmem_limit_bytes=_VMEM_LIMIT,
            ),
            cost_estimate=cost,
        )(x4)
    else:
        # Very deep C: also tile the channel (reduction) axis, accumulate in f32.
        s_tile = min_rows
        spatial_bytes = s_tile * 128 * dtype_bytes
        c_tile = min(c, max(1, block_budget_bytes // max(1, spatial_bytes)))
        # Zero-pad channels so c_tile divides C exactly (zeros don't change the
        # sum; the mean still divides by the original C via inv_c).
        c_pad = pl.cdiv(c, c_tile) * c_tile
        if c_pad != c:
            x4 = jnp.pad(x4, ((0, 0), (0, c_pad - c), (0, 0), (0, 0)))
        grid = (n, pl.cdiv(r, s_tile), c_pad // c_tile)
        out4 = pl.pallas_call(
            functools.partial(_pool_acc_kernel, inv_c=inv_c),
            out_shape=jax.ShapeDtypeStruct((n, 1, r, 128), x.dtype),
            grid_spec=pltpu.PrefetchScalarGridSpec(
                num_scalar_prefetch=0,
                grid=grid,
                in_specs=[
                    pl.BlockSpec(
                        (1, c_tile, s_tile, 128), lambda i, j, k: (i, k, j, 0)
                    )
                ],
                out_specs=pl.BlockSpec(
                    (1, 1, s_tile, 128), lambda i, j, k: (i, 0, j, 0)
                ),
                scratch_shapes=[pltpu.VMEM((1, 1, s_tile, 128), jnp.float32)],
            ),
            compiler_params=pltpu.CompilerParams(
                dimension_semantics=("parallel", "parallel", "arbitrary"),
                vmem_limit_bytes=_VMEM_LIMIT,
            ),
            cost_estimate=cost,
        )(x4)

    out3 = out4.reshape(n, 1, hw_pad)
    if hw_pad != hw:
        out3 = out3[:, :, :hw]
    return out3.reshape(n, 1, h, w)


if __name__ == "__main__":
    key = jax.random.PRNGKey(0)

    # Main case, consistent with the module's forward: NCHW, batch=2, C=4, 16x16.
    x = jax.random.normal(key, (2, 4, 16, 16), dtype=jnp.float32)
    out = channel_pool(x)
    jax.block_until_ready(out)
    ref = jnp.mean(x, axis=1, keepdims=True)
    assert out.shape == (2, 1, 16, 16), out.shape
    assert jnp.allclose(out, ref, atol=1e-6, rtol=1e-6), "mismatch vs reference"

    # Exercise the HW%128 padding path (no more slow fallback).
    x2 = jax.random.normal(jax.random.PRNGKey(1), (2, 3, 5, 7), dtype=jnp.float32)
    out2 = channel_pool(x2)
    jax.block_until_ready(out2)
    ref2 = jnp.mean(x2, axis=1, keepdims=True)
    assert out2.shape == (2, 1, 5, 7), out2.shape
    assert jnp.allclose(out2, ref2, atol=1e-6, rtol=1e-6), "mismatch (padded HW)"

    # Exercise the channel-tiled accumulator path by forcing a tiny block budget.
    x3 = jax.random.normal(jax.random.PRNGKey(2), (2, 6, 4, 40), dtype=jnp.float32)
    out3 = channel_pool(x3, block_budget_bytes=4096)
    jax.block_until_ready(out3)
    ref3 = jnp.mean(x3, axis=1, keepdims=True)
    assert out3.shape == (2, 1, 4, 40), out3.shape
    assert jnp.allclose(out3, ref3, atol=1e-6, rtol=1e-6), "mismatch (channel-tiled)"

    print("KERNEL_OK")
</pallas_src>

<mosaic_0001>
module attributes {stable_mosaic.version = 11 : i64} {
  func.func @_pool_kernel(%arg0: i32, %arg1: i32, %arg2: memref<1x4x2x128xf32, #tpu.memory_space<vmem>>, %arg3: memref<1x1x2x128xf32, #tpu.memory_space<vmem>>) attributes {dimension_semantics = [#tpu.dimension_semantics<parallel>, #tpu.dimension_semantics<parallel>], iteration_bounds = array<i64: 2, 1>, scalar_prefetch = 0 : i64, scratch_operands = 0 : i64, tpu.core_type = #tpu.core_type<tc>, window_params = [{transform_indices = @transform_0, window_bounds = array<i64: 1, 4, 2, 128>}, {transform_indices = @transform_1, window_bounds = array<i64: 1, 1, 2, 128>}]} {
    %c0 = arith.constant 0 : index
    %c0_0 = arith.constant 0 : index
    %c0_1 = arith.constant 0 : index
    %c0_2 = arith.constant 0 : index
    %0 = vector.load %arg2[%c0, %c0_0, %c0_1, %c0_2] : memref<1x4x2x128xf32, #tpu.memory_space<vmem>>, vector<1x4x2x128xf32>
    %cst = arith.constant dense<0.000000e+00> : vector<1x2x128xf32>
    %1 = vector.multi_reduction <add>, %0, %cst [1] : vector<1x4x2x128xf32> to vector<1x2x128xf32>
    %2 = vector.shape_cast %1 : vector<1x2x128xf32> to vector<1x1x2x128xf32>
    %cst_3 = arith.constant 2.500000e-01 : f32
    %3 = vector.broadcast %cst_3 : f32 to vector<1x1x2x128xf32>
    %4 = arith.mulf %2, %3 : vector<1x1x2x128xf32>
    %c0_4 = arith.constant 0 : index
    %c0_5 = arith.constant 0 : index
    %c0_6 = arith.constant 0 : index
    %c0_7 = arith.constant 0 : index
    %5 = vector.load %arg3[%c0_4, %c0_5, %c0_6, %c0_7] : memref<1x1x2x128xf32, #tpu.memory_space<vmem>>, vector<1x1x2x128xf32>
    tpu.vector_store %arg3[%c0_4, %c0_5, %c0_6, %c0_7], %4 {strides = array<i32>} : memref<1x1x2x128xf32, #tpu.memory_space<vmem>>, vector<1x1x2x128xf32>,
    return
  }
  func.func @transform_0(%arg0: i32, %arg1: i32) -> (i32, i32, i32, i32) {
    %c0_i32 = arith.constant 0 : i32
    %c0_i32_0 = arith.constant 0 : i32
    %c0_i32_1 = arith.constant 0 : i32
    return %arg0, %c0_i32, %arg1, %c0_i32_0 : i32, i32, i32, i32
  }
  func.func @transform_1(%arg0: i32, %arg1: i32) -> (i32, i32, i32, i32) {
    %c0_i32 = arith.constant 0 : i32
    %c0_i32_0 = arith.constant 0 : i32
    %c0_i32_1 = arith.constant 0 : i32
    return %arg0, %c0_i32, %arg1, %c0_i32_0 : i32, i32, i32, i32
  }
}

</mosaic_0001>

<llo_original>
// kernel: tpu_custom_call.1
$region0: #{tpu_custom_call.1}
  #allocation0 [shape = 'u32[]', space=smem, size = 0x4, offset = 0x4, fixed_abs, tag = 'smem constant byte address 0x4 - core index']
  #allocation1 [shape = 'u32[72,128]{1,0:T(1,128)}', space=vmem, size = 0x9000, scoped, tag = 'internal scratch']
  %s0 = inlined_call_operand.hbm [shape: f32[2,4,2,128], index: 0, kind: input, shape index: {}]
  %s1 = inlined_call_operand.hbm [shape: f32[2,1,2,128], index: 1, kind: output, shape index: {}]
  %s2 = sld [smem:[#allocation0]]
  $region41: #{tpu_custom_call.1} parent=0
    _
  %s4 = ssub.s32 1, %s2
  %s5 = scalar_select 0, %s4, %s2
  $region1: #{tpu_custom_call.1} parent=0
    #allocation2 [shape = 'u8[8192]{0}', space=vmem, size = 0x2000, scoped, tag = 'input window, operand 0']
    #allocation3 [shape = 's32[2]{0}', space=sflag, size = 0x8, scoped, tag = 'scoped memory for tpu_custom_call.1']
    #allocation4 [shape = 's32[2]{0}', space=sflag, size = 0x8, scoped, tag = 'scoped memory for tpu_custom_call.1']
    #allocation5 [shape = 'u8[2048]{0}', space=vmem, size = 0x800, scoped, tag = 'output window, operand 0']
    %6 = vsyncpa [#allocation3], 0
    %s7 = scalar_lea.sflag [#allocation3], 1
    %8 = vsyncpa %s7, 0
    %9 = vsyncpa [#allocation4], 0
    %s10 = scalar_lea.sflag [#allocation4], 1
    %11 = vsyncpa %s10, 0
    loop: start=0, step=1, limit=4
    $region2: #{tpu_custom_call.1} parent=1 // loop_pre_header
      _
    $region3: #{tpu_custom_call.1} parent=1 // loop_header
      %s13 = sphi 0, %s17
      %p14 = scmp.ge.s32.totalorder %s13, 4
      %s20 = sphi 0, %s32
      %s21 = sphi 0, %s28
      %s22 = sphi 0, %s20
      %s23 = sphi 0, %s21
      %s24 = sphi 0, %s22
      %s25 = sphi 0, %s23
      %s37 = sphi 0, %s39
      %s40 = sphi 0, %s37
      %s41 = sphi 0, %s40
      %s57 = sphi 0, %s41
      %s65 = sphi 0, %s67
      %s68 = sphi 0, %s65
      %s69 = sphi 0, %s68
      %s85 = sphi 0, %s69
    $region4: #{tpu_custom_call.1} parent=1 // loop_header_branch
      %16 = sbr.rel (%p14) target = $region8
    $region5: #{tpu_custom_call.1} parent=1 // loop_body
      %s18 = ssub.s32 %s13, 1
      %s19 = ssub.s32 %s13, 2
      %s26 = sadd.s32 1, %s21
      %p27 = scmp.ge.s32.totalorder %s26, 1
      %s28 = scalar_select %p27, 0, %s26
      %s29 = sadd.s32 1, %s20
      %s30 = scalar_select %p27, %s29, %s20
      %p31 = scmp.ge.s32.totalorder %s30, 2
      %s32 = scalar_select %p31, 0, %s30
      %s33 = ssub.s32 %s20, %s32
      %s34 = ssub.s32 %s21, %s28
      %s35 = sor.u32 %s33, %s34
      %p36 = scmp.eq.s32.totalorder %s35, 0
      %s38 = sadd.s32 %s37, 1
      %s39 = scalar_select %p36, %s37, %s38
      %p42 = pneg %p36
      %p43 = scmp.eq.s32.totalorder %s13, 1
      %p44 = por %p42, %p43
      %p45 = scmp.ne.s32.totalorder %s37, %s40
      %p46 = scmp.eq.s32.totalorder %s13, 0
      %p47 = por %p45, %p46
      %p48 = scmp.ne.s32.totalorder %s37, %s40
      %p49 = scmp.eq.s32.totalorder %s18, 1
      %p50 = por %p48, %p49
      %p51 = scmp.ne.s32.totalorder %s40, %s41
      %p52 = scmp.eq.s32.totalorder %s18, 0
      %p53 = por %p51, %p52
      %p54 = scmp.ne.s32.totalorder %s40, %s41
      %p55 = scmp.eq.s32.totalorder %s19, 1
      %p56 = por %p54, %p55
      %p58 = scmp.ne.s32.totalorder %s41, %s57
      %p59 = scmp.eq.s32.totalorder %s19, 0
      %p60 = por %p58, %p59
      %s61 = ssub.s32 %s20, %s32
      %s62 = ssub.s32 %s21, %s28
      %s63 = sor.u32 %s61, %s62
      %p64 = scmp.eq.s32.totalorder %s63, 0
      %s66 = sadd.s32 %s65, 1
      %s67 = scalar_select %p64, %s65, %s66
      %p70 = pneg %p64
      %p71 = scmp.eq.s32.totalorder %s13, 1
      %p72 = por %p70, %p71
      %p73 = scmp.ne.s32.totalorder %s65, %s68
      %p74 = scmp.eq.s32.totalorder %s13, 0
      %p75 = por %p73, %p74
      %p76 = scmp.ne.s32.totalorder %s65, %s68
      %p77 = scmp.eq.s32.totalorder %s18, 1
      %p78 = por %p76, %p77
      %p79 = scmp.ne.s32.totalorder %s68, %s69
      %p80 = scmp.eq.s32.totalorder %s18, 0
      %p81 = por %p79, %p80
      %p82 = scmp.ne.s32.totalorder %s68, %s69
      %p83 = scmp.eq.s32.totalorder %s19, 1
      %p84 = por %p82, %p83
      %p86 = scmp.ne.s32.totalorder %s69, %s85
      %p87 = scmp.eq.s32.totalorder %s19, 0
      %p88 = por %p86, %p87
      %p89 = scmp.le.s32.totalorder 1, %s13
      %p90 = scmp.lt.s32.totalorder %s13, 3
      %p91 = pnand %p89, %p90
      %p92 = pneg %p91
      // Predicated region
      $region9: #{tpu_custom_call.1} parent=5 // pred_check
        _
      $region10: #{tpu_custom_call.1} parent=5 // pred_check_branch
        %94 = sbr.rel (%p91) target = $region12
      $region11: #{tpu_custom_call.1} parent=5 // pred_region
        %s95 = ssub.s32 %s13, 1
      $region12: #{tpu_custom_call.1} parent=5 // pred_fallthru
        _
      %p96 = scmp.lt.s32.totalorder %s13, 2
      // Predicated region
      $region13: #{tpu_custom_call.1} parent=5 // pred_check
        %p97 = pneg %p96
      $region14: #{tpu_custom_call.1} parent=5 // pred_check_branch
        %99 = sbr.rel (%p97) target = $region16
      $region15: #{tpu_custom_call.1} parent=5 // pred_region
        // Predicated region
        $region17: #{tpu_custom_call.1} parent=15 // pred_check
          %p100 = pneg %p47
        $region18: #{tpu_custom_call.1} parent=15 // pred_check_branch
          %102 = sbr.rel (%p100) target = $region20
        $region19: #{tpu_custom_call.1} parent=15 // pred_region
          %s103 = sand.u32 %s37, 1
          %s104 = scalar_lea.sflag [#allocation3], %s103
          %s105 = sand.u32 %s37, 1
          %s106 = smul.addr %s105, 8
          %s107 = scalar_lea.vmem [#allocation2], %s106
          %109 = vsyncadd %s104, 0
          %s110 = smul.addr %s20, 4
          %s111 = sadd.s32 %s21, %s110
          %s112 = smul.addr %s111, 2
          %s113 = scalar_lea.hbm %s0, %s112
          %s114 = sshll.u32 %s113, 4
          %s115 = int_to_ptr.hbm [resolvable:$true] %s114
          %s116 = sshll.u32 %s107, 4
          %s117 = int_to_ptr.vmem [resolvable:$true] %s116
          %122 = dma.hbm_to_vmem [thread:$0]  %s115, 128, %s117, %s104, 32, 32, 2
        $region20: #{tpu_custom_call.1} parent=15 // pred_fallthru
          _
      $region16: #{tpu_custom_call.1} parent=5 // pred_fallthru
        _
      %p123 = scmp.le.s32.totalorder 1, %s13
      %p124 = scmp.lt.s32.totalorder %s13, 3
      %p125 = pnand %p123, %p124
      %p126 = pneg %p125
      // Predicated region
      $region21: #{tpu_custom_call.1} parent=5 // pred_check
        _
      $region22: #{tpu_custom_call.1} parent=5 // pred_check_branch
        %128 = sbr.rel (%p125) target = $region24
      $region23: #{tpu_custom_call.1} parent=5 // pred_region
        %s129 = ssub.s32 %s13, 1
        %s130 = sand.u32 %s40, 1
        %s131 = scalar_lea.sflag [#allocation3], %s130
        %s132 = sand.u32 %s40, 1
        %s133 = smul.addr %s132, 8
        %s134 = scalar_lea.vmem [#allocation2], %s133
        // Predicated region
        $region25: #{tpu_custom_call.1} parent=23 // pred_check
          %p135 = pneg %p53
        $region26: #{tpu_custom_call.1} parent=23 // pred_check_branch
          %137 = sbr.rel (%p135) target = $region28
        $region27: #{tpu_custom_call.1} parent=23 // pred_region
          %139 = dma.done %s131, 128
        $region28: #{tpu_custom_call.1} parent=23 // pred_fallthru
          _
        %s140 = sand.u32 %s40, 1
        %s141 = scalar_lea.sflag [#allocation3], %s140
        %s142 = sand.u32 %s40, 1
        %s143 = smul.addr %s142, 8
        %s144 = scalar_lea.vmem [#allocation2], %s143
        %p145 = pneg %p53
        %p146 = pneg %p50
        %p147 = pneg %p81
        %p148 = pneg %p78
        %s149 = sand.u32 %s68, 1
        %s150 = scalar_lea.sflag [#allocation4], %s149
        %s151 = sand.u32 %s68, 1
        %s152 = smul.addr %s151, 2
        %s153 = scalar_lea.vmem [#allocation5], %s152
        %v154 = vld [vmem:[%s134] sm:$0x3]
        %v155 = vld [vmem:[%s134 + $0x2] sm:$0x3]
        %v156 = vld [vmem:[%s134 + $0x4] sm:$0x3]
        %v157 = vld [vmem:[%s134 + $0x6] sm:$0x3]
        %vm158 = vcmask 1041408
        %v159 = vsel %vm158, %v154, 0.0
        %v160 = vsel %vm158, %v155, 0.0
        %v161 = vadd.f32 %v159, %v160
        %v162 = vsel %vm158, %v156, 0.0
        %v163 = vadd.f32 %v161, %v162
        %v164 = vsel %vm158, %v157, 0.0
        %v165 = vadd.f32 %v163, %v164
        %v166 = vmul.f32 %v165, 0.25
        %167 = vst [vmem:[%s153] sm:$0x3] %v166
        %s168 = sand.u32 %s68, 1
        %s169 = scalar_lea.sflag [#allocation4], %s168
        %s170 = sand.u32 %s68, 1
        %s171 = smul.addr %s170, 2
        %s172 = scalar_lea.vmem [#allocation5], %s171
        // Predicated region
        $region29: #{tpu_custom_call.1} parent=23 // pred_check
          %p173 = pneg %p78
        $region30: #{tpu_custom_call.1} parent=23 // pred_check_branch
          %175 = sbr.rel (%p173) target = $region32
        $region31: #{tpu_custom_call.1} parent=23 // pred_region
          %177 = vsyncadd %s169, 0
          %s178 = sadd.s32 %s23, %s22
          %s179 = smul.addr %s178, 2
          %s180 = scalar_lea.hbm %s1, %s179
          %s182 = sshll.u32 %s172, 4
          %s183 = int_to_ptr.vmem [resolvable:$true] %s182
          %s184 = sshll.u32 %s180, 4
          %s185 = int_to_ptr.hbm [resolvable:$true] %s184
          %187 = dma.vmem_to_hbm [thread:$0]  %s183, 32, %s185, %s169
        $region32: #{tpu_custom_call.1} parent=23 // pred_fallthru
          _
      $region24: #{tpu_custom_call.1} parent=5 // pred_fallthru
        _
      %p188 = scmp.le.s32.totalorder 2, %s13
      // Predicated region
      $region33: #{tpu_custom_call.1} parent=5 // pred_check
        %p189 = pneg %p188
      $region34: #{tpu_custom_call.1} parent=5 // pred_check_branch
        %191 = sbr.rel (%p189) target = $region36
      $region35: #{tpu_custom_call.1} parent=5 // pred_region
        %s192 = ssub.s32 %s13, 2
        // Predicated region
        $region37: #{tpu_custom_call.1} parent=35 // pred_check
          %p193 = pneg %p84
        $region38: #{tpu_custom_call.1} parent=35 // pred_check_branch
          %195 = sbr.rel (%p193) target = $region40
        $region39: #{tpu_custom_call.1} parent=35 // pred_region
          %s196 = sand.u32 %s69, 1
          %s197 = scalar_lea.sflag [#allocation4], %s196
          %s198 = sand.u32 %s69, 1
          %s199 = smul.addr %s198, 2
          %s200 = scalar_lea.vmem [#allocation5], %s199
          %202 = dma.done %s197, 32
        $region40: #{tpu_custom_call.1} parent=35 // pred_fallthru
          _
      $region36: #{tpu_custom_call.1} parent=5 // pred_fallthru
        _
    $region6: #{tpu_custom_call.1} parent=1 // loop_footer
      %s17 = sadd.s32 1, %s13
    $region7: #{tpu_custom_call.1} parent=1 // loop_footer_branch
      %12 = sbr.rel target = $region3
    $region8: #{tpu_custom_call.1} parent=1 // loop_exit
      _
    %203 = vsyncpa [#allocation3], 1
    %s204 = scalar_lea.sflag [#allocation3], 1
    %205 = vsyncpa %s204, 1
    %206 = vsyncpa [#allocation4], 1
    %s207 = scalar_lea.sflag [#allocation4], 1
    %208 = vsyncpa %s207, 1

</llo_original>
